<compile_context>
chip_gen: v7x
topology: tpu7x:2x2x1
jax: 0.10.0
libtpu: 0.0.40
codegen_flags: <defaults>
</compile_context>

<pallas_src>
import jax
import jax.numpy as jnp
from jax.experimental import pallas as pl
from jax.experimental.pallas import tpu as pltpu

SIZE = 5      # expansion size (matches nn.Module default size=5)
LANES = 128   # input lanes per slab row -> output rows are 5*128 = 640 lanes
SPLITS = 3    # 3-way exact bf16 split of the f32 input


def distance_expansion_kernel(x_ref, e_ref, c_ref, o_ref):
    # x_ref: (tr, 128)   f32   128 consecutive flattened input elements per row
    # e_ref: (384, 640)  bf16  stacked 0/1 expansion matrix [E; E; E],
    #                          E[l, j] = (j // SIZE == l)
    # c_ref: (1, 640)    f32   c[j] = 1 + starter[j % SIZE]
    # o_ref: (tr, 640)   f32   out[r, j] = (1 - (x[r, j//SIZE] - starter[j%SIZE]))**2
    x = x_ref[...]

    # Exact 3-way bf16 split of x (8+8+8 mantissa bits cover f32's 24), so the
    # MXU replication reproduces x to ~1e-7 relative error with cheap bf16 passes.
    x1 = x.astype(jnp.bfloat16)
    r1 = x - x1.astype(jnp.float32)
    x2 = r1.astype(jnp.bfloat16)
    x3 = (r1 - x2.astype(jnp.float32)).astype(jnp.bfloat16)

    # Single fused MXU pass (K = 3*128 = 384): the three split pieces accumulate
    # inside the MXU instead of via two full (tr, 640) f32 VPU adds.
    x_cat = jnp.concatenate([x1, x2, x3], axis=-1)                 # (tr, 384) bf16
    x_rep = jnp.dot(x_cat, e_ref[...],
                    preferred_element_type=jnp.float32)            # (tr, 640) f32

    z = c_ref[...] - x_rep            # == 1 - (x - starter_k), lane-dense
    o_ref[...] = z * z


def _pick_tile_rows(rows, tile_rows):
    """Balanced, 8-aligned row tile; >=2 grid steps for non-tiny inputs."""
    if rows <= 8:
        return rows                          # one block equal to the full array
    num_blocks = max(pl.cdiv(rows, tile_rows), 2)   # >=2 -> megacore sharding
    return pl.cdiv(pl.cdiv(rows, num_blocks), 8) * 8


def distance_expansion(x, starter, *, size=SIZE, tile_rows=2048):
    """x: (B, N, M) -> (B, N, M*size) float32, same semantics as the torch module.

    tile_rows: target rows per grid step. 2048 is a good default for v6e/v7x;
    1024 also works everywhere (v5e has the least DMA slack but fits either).
    """
    B, N, M = x.shape
    assert starter.shape == (size,), "starter must have exactly `size` entries"
    T = B * N * M
    W = LANES * size                         # output lanes per slab row (640)

    x = x.astype(jnp.float32)
    starter = starter.astype(jnp.float32)

    # ---- tiling: rows of 128 consecutive flattened elements. Only the <128-elem
    # ---- row tail is padded; a ragged last grid block is handled by Pallas'
    # ---- masked partial-block loads/stores (rows are independent, so OOB rows
    # ---- cannot contaminate valid rows).
    rows = pl.cdiv(T, LANES)
    Tp = rows * LANES
    flat = x.reshape(T)
    if Tp != T:
        flat = jnp.pad(flat, (0, Tp - T))
    x2 = flat.reshape(rows, LANES)

    tr = _pick_tile_rows(rows, tile_rows)
    grid = (pl.cdiv(rows, tr),)

    # ---- constants (built once; constant index maps keep them VMEM-resident)
    j = jnp.arange(W, dtype=jnp.int32)
    l = jnp.arange(LANES, dtype=jnp.int32)
    e = (j[None, :] // size == l[:, None]).astype(jnp.bfloat16)    # (128, 640)
    e_cat = jnp.concatenate([e] * SPLITS, axis=0)                  # (384, 640)
    c = (1.0 + jnp.tile(starter, LANES)).reshape(1, W)             # c[j] = 1 + starter[j%size]

    out2 = pl.pallas_call(
        distance_expansion_kernel,
        out_shape=jax.ShapeDtypeStruct((rows, W), jnp.float32),
        grid_spec=pltpu.PrefetchScalarGridSpec(
            num_scalar_prefetch=0,
            grid=grid,
            in_specs=[
                pl.BlockSpec((tr, LANES), lambda i: (i, 0)),
                pl.BlockSpec((SPLITS * LANES, W), lambda i: (0, 0)),
                pl.BlockSpec((1, W), lambda i: (0, 0)),
            ],
            out_specs=pl.BlockSpec((tr, W), lambda i: (i, 0)),
        ),
        compiler_params=pltpu.CompilerParams(
            dimension_semantics=("parallel",),
            vmem_limit_bytes=48 * 1024 * 1024,
        ),
    )(x2, e_cat, c)

    # Row-major (rows, 640) is exactly the flat (t*size + k) order of the torch
    # output; the slice only fires when the <128-element tail pad was added.
    out_flat = out2.reshape(Tp * size)
    if Tp != T:
        out_flat = out_flat[: T * size]
    return out_flat.reshape(B, N, M * size)


def _reference(x, starter, size):
    out = (1.0 - (x.reshape(-1, 1) - starter.reshape(1, size))) ** 2
    return out.reshape(x.shape[0], x.shape[1], x.shape[2] * size)


if __name__ == "__main__":
    key = jax.random.PRNGKey(0)

    # Deterministic "parameter" (buffer) init, same as the module's __init__:
    starter = jnp.arange(SIZE, dtype=jnp.float32) / SIZE

    # Case 1: small, nicely divisible shape (B*N*M == 128).
    B, N, M = 2, 4, 16
    k1, k2 = jax.random.split(key)
    x = jax.random.uniform(k1, (B, N, M), dtype=jnp.float32)
    out = jax.block_until_ready(distance_expansion(x, starter))
    ref = _reference(x, starter, SIZE)
    assert out.shape == (B, N, M * SIZE)
    assert jnp.allclose(out, ref, atol=1e-5, rtol=1e-5), float(jnp.max(jnp.abs(out - ref)))

    # Case 2: non-divisible shape -> exercises the <128-elem tail pad and the
    # ragged (masked) last grid block.
    B2, N2, M2 = 3, 5, 70
    x2 = jax.random.uniform(k2, (B2, N2, M2), dtype=jnp.float32)
    out2 = jax.block_until_ready(distance_expansion(x2, starter))
    ref2 = _reference(x2, starter, SIZE)
    assert out2.shape == (B2, N2, M2 * SIZE)
    assert jnp.allclose(out2, ref2, atol=1e-5, rtol=1e-5), float(jnp.max(jnp.abs(out2 - ref2)))

    print("KERNEL_OK")
</pallas_src>

<mosaic_0001>
module attributes {stable_mosaic.version = 11 : i64} {
  func.func @distance_expansion_kernel(%arg0: i32, %arg1: memref<1x128xf32, #tpu.memory_space<vmem>>, %arg2: memref<384x640xbf16, #tpu.memory_space<vmem>>, %arg3: memref<1x640xf32, #tpu.memory_space<vmem>>, %arg4: memref<1x640xf32, #tpu.memory_space<vmem>>) attributes {dimension_semantics = [#tpu.dimension_semantics<parallel>], iteration_bounds = array<i64: 1>, scalar_prefetch = 0 : i64, scratch_operands = 0 : i64, tpu.core_type = #tpu.core_type<tc>, window_params = [{transform_indices = @transform_0, window_bounds = array<i64: 1, 128>}, {pipeline_mode = #tpu.pipeline_mode<synchronous>, transform_indices = @transform_1, window_bounds = array<i64: 384, 640>}, {pipeline_mode = #tpu.pipeline_mode<synchronous>, transform_indices = @transform_2, window_bounds = array<i64: 1, 640>}, {transform_indices = @transform_3, window_bounds = array<i64: 1, 640>}]} {
    %c0 = arith.constant 0 : index
    %c0_0 = arith.constant 0 : index
    %0 = vector.load %arg1[%c0, %c0_0] : memref<1x128xf32, #tpu.memory_space<vmem>>, vector<1x128xf32>
    %1 = arith.truncf %0 : vector<1x128xf32> to vector<1x128xbf16>
    %2 = arith.extf %1 : vector<1x128xbf16> to vector<1x128xf32>
    %3 = arith.subf %0, %2 : vector<1x128xf32>
    %4 = arith.truncf %3 : vector<1x128xf32> to vector<1x128xbf16>
    %5 = arith.extf %4 : vector<1x128xbf16> to vector<1x128xf32>
    %6 = arith.subf %3, %5 : vector<1x128xf32>
    %7 = arith.truncf %6 : vector<1x128xf32> to vector<1x128xbf16>
    %8 = tpu.concatenate %1, %4, %7 in 1 : vector<1x128xbf16>, vector<1x128xbf16>, vector<1x128xbf16> -> vector<1x384xbf16>
    %c0_1 = arith.constant 0 : index
    %c0_2 = arith.constant 0 : index
    %9 = vector.load %arg2[%c0_1, %c0_2] : memref<384x640xbf16, #tpu.memory_space<vmem>>, vector<384x640xbf16>
    %cst = arith.constant dense<0.000000e+00> : vector<1x640xf32>
    %10 = tpu.matmul %8, %9, %cst {dimension_numbers = #tpu.dot_dimension_numbers<[1], [0], [0], [1], [0, 0, 1, 1], [], []>} : vector<1x384xbf16>, vector<384x640xbf16>, vector<1x640xf32> -> vector<1x640xf32>
    %c0_3 = arith.constant 0 : index
    %c0_4 = arith.constant 0 : index
    %11 = vector.load %arg3[%c0_3, %c0_4] : memref<1x640xf32, #tpu.memory_space<vmem>>, vector<1x640xf32>
    %12 = arith.subf %11, %10 : vector<1x640xf32>
    %13 = arith.mulf %12, %12 : vector<1x640xf32>
    %c0_5 = arith.constant 0 : index
    %c0_6 = arith.constant 0 : index
    %14 = vector.load %arg4[%c0_5, %c0_6] : memref<1x640xf32, #tpu.memory_space<vmem>>, vector<1x640xf32>
    tpu.vector_store %arg4[%c0_5, %c0_6], %13 {strides = array<i32>} : memref<1x640xf32, #tpu.memory_space<vmem>>, vector<1x640xf32>,
    return
  }
  func.func @transform_0(%arg0: i32) -> (i32, i32) {
    %c0_i32 = arith.constant 0 : i32
    %c0_i32_0 = arith.constant 0 : i32
    return %arg0, %c0_i32 : i32, i32
  }
  func.func @transform_1(%arg0: i32) -> (i32, i32) {
    %c0_i32 = arith.constant 0 : i32
    %c0_i32_0 = arith.constant 0 : i32
    %c0_i32_1 = arith.constant 0 : i32
    return %c0_i32, %c0_i32_0 : i32, i32
  }
  func.func @transform_2(%arg0: i32) -> (i32, i32) {
    %c0_i32 = arith.constant 0 : i32
    %c0_i32_0 = arith.constant 0 : i32
    %c0_i32_1 = arith.constant 0 : i32
    return %c0_i32, %c0_i32_0 : i32, i32
  }
  func.func @transform_3(%arg0: i32) -> (i32, i32) {
    %c0_i32 = arith.constant 0 : i32
    %c0_i32_0 = arith.constant 0 : i32
    return %arg0, %c0_i32 : i32, i32
  }
}

</mosaic_0001>

<llo_original>
// kernel: tpu_custom_call.1
$region0: #{tpu_custom_call.1}
  #allocation0 [shape = 'u32[]', space=smem, size = 0x4, offset = 0x4, fixed_abs, tag = 'smem constant byte address 0x4 - core index']
  #allocation1 [shape = 'u32[144,128]{1,0:T(1,128)}', space=vmem, size = 0x12000, scoped, tag = 'internal scratch']
  %s0 = inlined_call_operand.hbm [shape: f32[1,128], index: 0, kind: input, shape index: {}]
  %s1 = inlined_call_operand.hbm [shape: bf16[384,640], index: 1, kind: input, shape index: {}]
  %s2 = inlined_call_operand.vmem [shape: f32[1,640], index: 2, kind: input, shape index: {}]
  %s3 = inlined_call_operand.hbm [shape: f32[1,640], index: 3, kind: output, shape index: {}]
  %s4 = sld [smem:[#allocation0]]
  $region30: #{tpu_custom_call.1} parent=0
    _
  %s6 = ssub.s32 1, %s4
  %s7 = scalar_select 0, %s6, %s4
  $region1: #{tpu_custom_call.1} parent=0
    #allocation2 [shape = 'u8[512]{0}', space=vmem, size = 0x400, scoped, tag = 'input window, operand 0, single buffered']
    #allocation3 [shape = 's32[1]{0}', space=sflag, size = 0x4, scoped, tag = 'scoped memory for tpu_custom_call.1']
    #allocation4 [shape = 's32[1]{0}', space=sflag, size = 0x4, scoped, tag = 'scoped memory for tpu_custom_call.1']
    #allocation5 [shape = 'u8[491520]{0}', space=vmem, size = 0x78000, scoped, tag = 'input window, operand 1, single buffered']
    #allocation6 [shape = 's32[1]{0}', space=sflag, size = 0x4, scoped, tag = 'scoped memory for tpu_custom_call.1']
    #allocation7 [shape = 'u8[2560]{0}', space=vmem, size = 0xc00, scoped, tag = 'output window, operand 0, single buffered']
    %8 = vsyncpa [#allocation3], 0
    %9 = vsyncpa [#allocation6], 0
    %10 = vsyncpa [#allocation4], 0
    // Predicated region
    $region2: #{tpu_custom_call.1} parent=1 // pred_check
      _
    $region3: #{tpu_custom_call.1} parent=1 // pred_check_branch
      %12 = sbr.rel (0) target = $region5
    $region4: #{tpu_custom_call.1} parent=1 // pred_region
      %s14 = ssub.s32 16, 16
      %15 = vsyncadd [#allocation3], %s14
      %s17 = sshll.u32 [#allocation2], 4
      %s18 = int_to_ptr.vmem [resolvable:$true] %s17
      %20 = dma.hbm_to_vmem [thread:$0]  %s0, 16, %s18, [#allocation3]
    $region5: #{tpu_custom_call.1} parent=1 // pred_fallthru
      _
    // Predicated region
    $region6: #{tpu_custom_call.1} parent=1 // pred_check
      _
    $region7: #{tpu_custom_call.1} parent=1 // pred_check_branch
      %22 = sbr.rel (0) target = $region9
    $region8: #{tpu_custom_call.1} parent=1 // pred_region
      %s24 = ssub.s32 15360, 15360
      %25 = vsyncadd [#allocation6], %s24
      %s26 = sshll.u32 [#allocation5], 4
      %s27 = int_to_ptr.vmem [resolvable:$true] %s26
      %32 = dma.hbm_to_vmem [thread:$0]  %s1, 15360, %s27, [#allocation6], 320, 320, 20
    $region9: #{tpu_custom_call.1} parent=1 // pred_fallthru
      _
    // Predicated region
    $region10: #{tpu_custom_call.1} parent=1 // pred_check
      _
    $region11: #{tpu_custom_call.1} parent=1 // pred_check_branch
      %34 = sbr.rel (0) target = $region13
    $region12: #{tpu_custom_call.1} parent=1 // pred_region
      _
    $region13: #{tpu_custom_call.1} parent=1 // pred_fallthru
      _
    // Predicated region
    $region14: #{tpu_custom_call.1} parent=1 // pred_check
      _
    $region15: #{tpu_custom_call.1} parent=1 // pred_check_branch
      %36 = sbr.rel (0) target = $region17
    $region16: #{tpu_custom_call.1} parent=1 // pred_region
      %37 = dma.done [#allocation3], 16
    $region17: #{tpu_custom_call.1} parent=1 // pred_fallthru
      _
    // Predicated region
    $region18: #{tpu_custom_call.1} parent=1 // pred_check
      _
    $region19: #{tpu_custom_call.1} parent=1 // pred_check_branch
      %39 = sbr.rel (0) target = $region21
    $region20: #{tpu_custom_call.1} parent=1 // pred_region
      %40 = dma.done [#allocation6], 15360
    $region21: #{tpu_custom_call.1} parent=1 // pred_fallthru
      _
    %v42 = vld [vmem:[#allocation2] sm:$0x1]
    %v43 = vpack.c.bf16 %v42, %v42
    %v44 = vunpack.c.l.bf16 %v43
    %v45 = vsub.f32 %v42, %v44
    %v46 = vpack.c.bf16 %v45, %v45
    %v47 = vunpack.c.l.bf16 %v46
    %v48 = vsub.f32 %v45, %v47
    %v49 = vpack.c.bf16 %v48, %v48
    %v50 = vld [vmem:[#allocation5] sm:$0xff]
    %v51 = vld [vmem:[#allocation5 + $0x8] sm:$0xff]
    %v52 = vld [vmem:[#allocation5 + $0x10] sm:$0xf]
    %v53 = vld [vmem:[#allocation5 + $0x14] sm:$0xff]
    %v54 = vld [vmem:[#allocation5 + $0x1c] sm:$0xff]
    %v55 = vld [vmem:[#allocation5 + $0x24] sm:$0xf]
    %v56 = vld [vmem:[#allocation5 + $0x28] sm:$0xff]
    %v57 = vld [vmem:[#allocation5 + $0x30] sm:$0xff]
    %v58 = vld [vmem:[#allocation5 + $0x38] sm:$0xf]
    %v59 = vld [vmem:[#allocation5 + $0x3c] sm:$0xff]
    %v60 = vld [vmem:[#allocation5 + $0x44] sm:$0xff]
    %v61 = vld [vmem:[#allocation5 + $0x4c] sm:$0xf]
    %v62 = vld [vmem:[#allocation5 + $0x50] sm:$0xff]
    %v63 = vld [vmem:[#allocation5 + $0x58] sm:$0xff]
    %v64 = vld [vmem:[#allocation5 + $0x60] sm:$0xf]
    %v65 = vld [vmem:[#allocation5 + $0x64] sm:$0xff]
    %v66 = vld [vmem:[#allocation5 + $0x6c] sm:$0xff]
    %v67 = vld [vmem:[#allocation5 + $0x74] sm:$0xf]
    %v68 = vld [vmem:[#allocation5 + $0x78] sm:$0xff]
    %v69 = vld [vmem:[#allocation5 + $0x80] sm:$0xff]
    %v70 = vld [vmem:[#allocation5 + $0x88] sm:$0xf]
    %v71 = vld [vmem:[#allocation5 + $0x8c] sm:$0xff]
    %v72 = vld [vmem:[#allocation5 + $0x94] sm:$0xff]
    %v73 = vld [vmem:[#allocation5 + $0x9c] sm:$0xf]
    %v74 = vld [vmem:[#allocation5 + $0xa0] sm:$0xff]
    %v75 = vld [vmem:[#allocation5 + $0xa8] sm:$0xff]
    %v76 = vld [vmem:[#allocation5 + $0xb0] sm:$0xf]
    %v77 = vld [vmem:[#allocation5 + $0xb4] sm:$0xff]
    %v78 = vld [vmem:[#allocation5 + $0xbc] sm:$0xff]
    %v79 = vld [vmem:[#allocation5 + $0xc4] sm:$0xf]
    %v80 = vld [vmem:[#allocation5 + $0xc8] sm:$0xff]
    %v81 = vld [vmem:[#allocation5 + $0xd0] sm:$0xff]
    %v82 = vld [vmem:[#allocation5 + $0xd8] sm:$0xf]
    %v83 = vld [vmem:[#allocation5 + $0xdc] sm:$0xff]
    %v84 = vld [vmem:[#allocation5 + $0xe4] sm:$0xff]
    %v85 = vld [vmem:[#allocation5 + $0xec] sm:$0xf]
    %v86 = vld [vmem:[#allocation5 + $0xf0] sm:$0xff]
    %v87 = vld [vmem:[#allocation5 + $0xf8] sm:$0xff]
    %v88 = vld [vmem:[#allocation5 + $0x100] sm:$0xf]
    %v89 = vld [vmem:[#allocation5 + $0x104] sm:$0xff]
    %v90 = vld [vmem:[#allocation5 + $0x10c] sm:$0xff]
    %v91 = vld [vmem:[#allocation5 + $0x114] sm:$0xf]
    %v92 = vld [vmem:[#allocation5 + $0x118] sm:$0xff]
    %v93 = vld [vmem:[#allocation5 + $0x120] sm:$0xff]
    %v94 = vld [vmem:[#allocation5 + $0x128] sm:$0xf]
    %v95 = vld [vmem:[#allocation5 + $0x12c] sm:$0xff]
    %v96 = vld [vmem:[#allocation5 + $0x134] sm:$0xff]
    %v97 = vld [vmem:[#allocation5 + $0x13c] sm:$0xf]
    %v98 = vld [vmem:[#allocation5 + $0x140] sm:$0xff]
    %v99 = vld [vmem:[#allocation5 + $0x148] sm:$0xff]
    %v100 = vld [vmem:[#allocation5 + $0x150] sm:$0xf]
    %v101 = vld [vmem:[#allocation5 + $0x154] sm:$0xff]
    %v102 = vld [vmem:[#allocation5 + $0x15c] sm:$0xff]
    %v103 = vld [vmem:[#allocation5 + $0x164] sm:$0xf]
    %v104 = vld [vmem:[#allocation5 + $0x168] sm:$0xff]
    %v105 = vld [vmem:[#allocation5 + $0x170] sm:$0xff]
    %v106 = vld [vmem:[#allocation5 + $0x178] sm:$0xf]
    %v107 = vld [vmem:[#allocation5 + $0x17c] sm:$0xff]
    %v108 = vld [vmem:[#allocation5 + $0x184] sm:$0xff]
    %v109 = vld [vmem:[#allocation5 + $0x18c] sm:$0xf]
    %v110 = vld [vmem:[#allocation5 + $0x190] sm:$0xff]
    %v111 = vld [vmem:[#allocation5 + $0x198] sm:$0xff]
    %v112 = vld [vmem:[#allocation5 + $0x1a0] sm:$0xf]
    %v113 = vld [vmem:[#allocation5 + $0x1a4] sm:$0xff]
    %v114 = vld [vmem:[#allocation5 + $0x1ac] sm:$0xff]
    %v115 = vld [vmem:[#allocation5 + $0x1b4] sm:$0xf]
    %v116 = vld [vmem:[#allocation5 + $0x1b8] sm:$0xff]
    %v117 = vld [vmem:[#allocation5 + $0x1c0] sm:$0xff]
    %v118 = vld [vmem:[#allocation5 + $0x1c8] sm:$0xf]
    %v119 = vld [vmem:[#allocation5 + $0x1cc] sm:$0xff]
    %v120 = vld [vmem:[#allocation5 + $0x1d4] sm:$0xff]
    %v121 = vld [vmem:[#allocation5 + $0x1dc] sm:$0xf]
    %v122 = vld [vmem:[#allocation5 + $0x1e0] sm:$0xff]
    %v123 = vld [vmem:[#allocation5 + $0x1e8] sm:$0xff]
    %v124 = vld [vmem:[#allocation5 + $0x1f0] sm:$0xf]
    %v125 = vld [vmem:[#allocation5 + $0x1f4] sm:$0xff]
    %v126 = vld [vmem:[#allocation5 + $0x1fc] sm:$0xff]
    %v127 = vld [vmem:[#allocation5 + $0x204] sm:$0xf]
    %v128 = vld [vmem:[#allocation5 + $0x208] sm:$0xff]
    %v129 = vld [vmem:[#allocation5 + $0x210] sm:$0xff]
    %v130 = vld [vmem:[#allocation5 + $0x218] sm:$0xf]
    %v131 = vld [vmem:[#allocation5 + $0x21c] sm:$0xff]
    %v132 = vld [vmem:[#allocation5 + $0x224] sm:$0xff]
    %v133 = vld [vmem:[#allocation5 + $0x22c] sm:$0xf]
    %v134 = vld [vmem:[#allocation5 + $0x230] sm:$0xff]
    %v135 = vld [vmem:[#allocation5 + $0x238] sm:$0xff]
    %v136 = vld [vmem:[#allocation5 + $0x240] sm:$0xf]
    %v137 = vld [vmem:[#allocation5 + $0x244] sm:$0xff]
    %v138 = vld [vmem:[#allocation5 + $0x24c] sm:$0xff]
    %v139 = vld [vmem:[#allocation5 + $0x254] sm:$0xf]
    %v140 = vld [vmem:[#allocation5 + $0x258] sm:$0xff]
    %v141 = vld [vmem:[#allocation5 + $0x260] sm:$0xff]
    %v142 = vld [vmem:[#allocation5 + $0x268] sm:$0xf]
    %v143 = vld [vmem:[#allocation5 + $0x26c] sm:$0xff]
    %v144 = vld [vmem:[#allocation5 + $0x274] sm:$0xff]
    %v145 = vld [vmem:[#allocation5 + $0x27c] sm:$0xf]
    %v146 = vld [vmem:[#allocation5 + $0x280] sm:$0xff]
    %v147 = vld [vmem:[#allocation5 + $0x288] sm:$0xff]
    %v148 = vld [vmem:[#allocation5 + $0x290] sm:$0xf]
    %v149 = vld [vmem:[#allocation5 + $0x294] sm:$0xff]
    %v150 = vld [vmem:[#allocation5 + $0x29c] sm:$0xff]
    %v151 = vld [vmem:[#allocation5 + $0x2a4] sm:$0xf]
    %v152 = vld [vmem:[#allocation5 + $0x2a8] sm:$0xff]
    %v153 = vld [vmem:[#allocation5 + $0x2b0] sm:$0xff]
    %v154 = vld [vmem:[#allocation5 + $0x2b8] sm:$0xf]
    %v155 = vld [vmem:[#allocation5 + $0x2bc] sm:$0xff]
    %v156 = vld [vmem:[#allocation5 + $0x2c4] sm:$0xff]
    %v157 = vld [vmem:[#allocation5 + $0x2cc] sm:$0xf]
    %v158 = vld [vmem:[#allocation5 + $0x2d0] sm:$0xff]
    %v159 = vld [vmem:[#allocation5 + $0x2d8] sm:$0xff]
    %v160 = vld [vmem:[#allocation5 + $0x2e0] sm:$0xf]
    %v161 = vld [vmem:[#allocation5 + $0x2e4] sm:$0xff]
    %v162 = vld [vmem:[#allocation5 + $0x2ec] sm:$0xff]
    %v163 = vld [vmem:[#allocation5 + $0x2f4] sm:$0xf]
    %v164 = vld [vmem:[#allocation5 + $0x2f8] sm:$0xff]
    %v165 = vld [vmem:[#allocation5 + $0x300] sm:$0xff]
    %v166 = vld [vmem:[#allocation5 + $0x308] sm:$0xf]
    %v167 = vld [vmem:[#allocation5 + $0x30c] sm:$0xff]
    %v168 = vld [vmem:[#allocation5 + $0x314] sm:$0xff]
    %v169 = vld [vmem:[#allocation5 + $0x31c] sm:$0xf]
    %v170 = vld [vmem:[#allocation5 + $0x320] sm:$0xff]
    %v171 = vld [vmem:[#allocation5 + $0x328] sm:$0xff]
    %v172 = vld [vmem:[#allocation5 + $0x330] sm:$0xf]
    %v173 = vld [vmem:[#allocation5 + $0x334] sm:$0xff]
    %v174 = vld [vmem:[#allocation5 + $0x33c] sm:$0xff]
    %v175 = vld [vmem:[#allocation5 + $0x344] sm:$0xf]
    %v176 = vld [vmem:[#allocation5 + $0x348] sm:$0xff]
    %v177 = vld [vmem:[#allocation5 + $0x350] sm:$0xff]
    %v178 = vld [vmem:[#allocation5 + $0x358] sm:$0xf]
    %v179 = vld [vmem:[#allocation5 + $0x35c] sm:$0xff]
    %v180 = vld [vmem:[#allocation5 + $0x364] sm:$0xff]
    %v181 = vld [vmem:[#allocation5 + $0x36c] sm:$0xf]
    %v182 = vld [vmem:[#allocation5 + $0x370] sm:$0xff]
    %v183 = vld [vmem:[#allocation5 + $0x378] sm:$0xff]
    %v184 = vld [vmem:[#allocation5 + $0x380] sm:$0xf]
    %v185 = vld [vmem:[#allocation5 + $0x384] sm:$0xff]
    %v186 = vld [vmem:[#allocation5 + $0x38c] sm:$0xff]
    %v187 = vld [vmem:[#allocation5 + $0x394] sm:$0xf]
    %v188 = vld [vmem:[#allocation5 + $0x398] sm:$0xff]
    %v189 = vld [vmem:[#allocation5 + $0x3a0] sm:$0xff]
    %v190 = vld [vmem:[#allocation5 + $0x3a8] sm:$0xf]
    %v191 = vld [vmem:[#allocation5 + $0x3ac] sm:$0xff]
    %v192 = vld [vmem:[#allocation5 + $0x3b4] sm:$0xff]
    %v193 = vld [vmem:[#allocation5 + $0x3bc] sm:$0xf]
    %v338 = vunpack.c.l.b16 %v50
    %v339 = vunpack.c.h.b16 %v50
    %v340 = vunpack.c.l.b16 %v51
    %v341 = vunpack.c.h.b16 %v51
    %v342 = vunpack.c.l.b16 %v52
    %v343 = vunpack.c.l.b16 %v53
    %v344 = vunpack.c.h.b16 %v53
    %v345 = vunpack.c.l.b16 %v54
    %v346 = vunpack.c.h.b16 %v54
    %v347 = vunpack.c.l.b16 %v55
    %v348 = vunpack.c.l.b16 %v56
    %v349 = vunpack.c.h.b16 %v56
    %v350 = vunpack.c.l.b16 %v57
    %v351 = vunpack.c.h.b16 %v57
    %v352 = vunpack.c.l.b16 %v58
    %v353 = vunpack.c.l.b16 %v59
    %v354 = vunpack.c.h.b16 %v59
    %v355 = vunpack.c.l.b16 %v60
    %v356 = vunpack.c.h.b16 %v60
    %v357 = vunpack.c.l.b16 %v61
    %v358 = vunpack.c.l.b16 %v62
    %v359 = vunpack.c.h.b16 %v62
    %v360 = vunpack.c.l.b16 %v63
    %v361 = vunpack.c.h.b16 %v63
    %v362 = vunpack.c.l.b16 %v64
    %v363 = vunpack.c.l.b16 %v65
    %v364 = vunpack.c.h.b16 %v65
    %v365 = vunpack.c.l.b16 %v66
    %v366 = vunpack.c.h.b16 %v66
    %v367 = vunpack.c.l.b16 %v67
    %v368 = vunpack.c.l.b16 %v68
    %v369 = vunpack.c.h.b16 %v68
    %v370 = vunpack.c.l.b16 %v69
    %v371 = vunpack.c.h.b16 %v69
    %v372 = vunpack.c.l.b16 %v70
    %v373 = vunpack.c.l.b16 %v71
    %v374 = vunpack.c.h.b16 %v71
    %v375 = vunpack.c.l.b16 %v72
    %v376 = vunpack.c.h.b16 %v72
    %v377 = vunpack.c.l.b16 %v73
    %v378 = vunpack.c.l.b16 %v74
    %v379 = vunpack.c.h.b16 %v74
    %v380 = vunpack.c.l.b16 %v75
    %v381 = vunpack.c.h.b16 %v75
    %v382 = vunpack.c.l.b16 %v76
    %v383 = vunpack.c.l.b16 %v77
    %v384 = vunpack.c.h.b16 %v77
    %v385 = vunpack.c.l.b16 %v78
    %v386 = vunpack.c.h.b16 %v78
    %v387 = vunpack.c.l.b16 %v79
    %v388 = vunpack.c.l.b16 %v80
    %v389 = vunpack.c.h.b16 %v80
    %v390 = vunpack.c.l.b16 %v81
    %v391 = vunpack.c.h.b16 %v81
    %v392 = vunpack.c.l.b16 %v82
    %v393 = vunpack.c.l.b16 %v83
    %v394 = vunpack.c.h.b16 %v83
    %v395 = vunpack.c.l.b16 %v84
    %v396 = vunpack.c.h.b16 %v84
    %v397 = vunpack.c.l.b16 %v85
    %v398 = vunpack.c.l.b16 %v86
    %v399 = vunpack.c.h.b16 %v86
    %v400 = vunpack.c.l.b16 %v87
    %v401 = vunpack.c.h.b16 %v87
    %v402 = vunpack.c.l.b16 %v88
    %v403 = vunpack.c.l.b16 %v89
    %v404 = vunpack.c.h.b16 %v89
    %v405 = vunpack.c.l.b16 %v90
    %v406 = vunpack.c.h.b16 %v90
    %v407 = vunpack.c.l.b16 %v91
    %v408 = vunpack.c.l.b16 %v92
    %v409 = vunpack.c.h.b16 %v92
    %v410 = vunpack.c.l.b16 %v93
    %v411 = vunpack.c.h.b16 %v93
    %v412 = vunpack.c.l.b16 %v94
    %v413 = vunpack.c.l.b16 %v95
    %v414 = vunpack.c.h.b16 %v95
    %v415 = vunpack.c.l.b16 %v96
    %v416 = vunpack.c.h.b16 %v96
    %v417 = vunpack.c.l.b16 %v97
    %v418 = vunpack.c.l.b16 %v98
    %v419 = vunpack.c.h.b16 %v98
    %v420 = vunpack.c.l.b16 %v99
    %v421 = vunpack.c.h.b16 %v99
    %v422 = vunpack.c.l.b16 %v100
    %v423 = vunpack.c.l.b16 %v101
    %v424 = vunpack.c.h.b16 %v101
    %v425 = vunpack.c.l.b16 %v102
    %v426 = vunpack.c.h.b16 %v102
    %v427 = vunpack.c.l.b16 %v103
    %v428 = vunpack.c.l.b16 %v104
    %v429 = vunpack.c.h.b16 %v104
    %v430 = vunpack.c.l.b16 %v105
    %v431 = vunpack.c.h.b16 %v105
    %v432 = vunpack.c.l.b16 %v106
    %v433 = vunpack.c.l.b16 %v107
    %v434 = vunpack.c.h.b16 %v107
    %v435 = vunpack.c.l.b16 %v108
    %v436 = vunpack.c.h.b16 %v108
    %v437 = vunpack.c.l.b16 %v109
    %v438 = vunpack.c.l.b16 %v110
    %v439 = vunpack.c.h.b16 %v110
    %v440 = vunpack.c.l.b16 %v111
    %v441 = vunpack.c.h.b16 %v111
    %v442 = vunpack.c.l.b16 %v112
    %v443 = vunpack.c.l.b16 %v113
    %v444 = vunpack.c.h.b16 %v113
    %v445 = vunpack.c.l.b16 %v114
    %v446 = vunpack.c.h.b16 %v114
    %v447 = vunpack.c.l.b16 %v115
    %v448 = vunpack.c.l.b16 %v116
    %v449 = vunpack.c.h.b16 %v116
    %v450 = vunpack.c.l.b16 %v117
    %v451 = vunpack.c.h.b16 %v117
    %v452 = vunpack.c.l.b16 %v118
    %v453 = vunpack.c.l.b16 %v119
    %v454 = vunpack.c.h.b16 %v119
    %v455 = vunpack.c.l.b16 %v120
    %v456 = vunpack.c.h.b16 %v120
    %v457 = vunpack.c.l.b16 %v121
    %v458 = vunpack.c.l.b16 %v122
    %v459 = vunpack.c.h.b16 %v122
    %v460 = vunpack.c.l.b16 %v123
    %v461 = vunpack.c.h.b16 %v123
    %v462 = vunpack.c.l.b16 %v124
    %v463 = vunpack.c.l.b16 %v125
    %v464 = vunpack.c.h.b16 %v125
    %v465 = vunpack.c.l.b16 %v126
    %v466 = vunpack.c.h.b16 %v126
    %v467 = vunpack.c.l.b16 %v127
    %v468 = vunpack.c.l.b16 %v128
    %v469 = vunpack.c.h.b16 %v128
    %v470 = vunpack.c.l.b16 %v129
    %v471 = vunpack.c.h.b16 %v129
    %v472 = vunpack.c.l.b16 %v130
    %v473 = vunpack.c.l.b16 %v131
    %v474 = vunpack.c.h.b16 %v131
    %v475 = vunpack.c.l.b16 %v132
    %v476 = vunpack.c.h.b16 %v132
    %v477 = vunpack.c.l.b16 %v133
    %v478 = vunpack.c.l.b16 %v134
    %v479 = vunpack.c.h.b16 %v134
    %v480 = vunpack.c.l.b16 %v135
    %v481 = vunpack.c.h.b16 %v135
    %v482 = vunpack.c.l.b16 %v136
    %v483 = vunpack.c.l.b16 %v137
    %v484 = vunpack.c.h.b16 %v137
    %v485 = vunpack.c.l.b16 %v138
    %v486 = vunpack.c.h.b16 %v138
    %v487 = vunpack.c.l.b16 %v139
    %v488 = vunpack.c.l.b16 %v140
    %v489 = vunpack.c.h.b16 %v140
    %v490 = vunpack.c.l.b16 %v141
    %v491 = vunpack.c.h.b16 %v141
    %v492 = vunpack.c.l.b16 %v142
    %v493 = vunpack.c.l.b16 %v143
    %v494 = vunpack.c.h.b16 %v143
    %v495 = vunpack.c.l.b16 %v144
    %v496 = vunpack.c.h.b16 %v144
    %v497 = vunpack.c.l.b16 %v145
    %v498 = vunpack.c.l.b16 %v146
    %v499 = vunpack.c.h.b16 %v146
    %v500 = vunpack.c.l.b16 %v147
    %v501 = vunpack.c.h.b16 %v147
    %v502 = vunpack.c.l.b16 %v148
    %v503 = vunpack.c.l.b16 %v149
    %v504 = vunpack.c.h.b16 %v149
    %v505 = vunpack.c.l.b16 %v150
    %v506 = vunpack.c.h.b16 %v150
    %v507 = vunpack.c.l.b16 %v151
    %v508 = vunpack.c.l.b16 %v152
    %v509 = vunpack.c.h.b16 %v152
    %v510 = vunpack.c.l.b16 %v153
    %v511 = vunpack.c.h.b16 %v153
    %v512 = vunpack.c.l.b16 %v154
    %v513 = vunpack.c.l.b16 %v155
    %v514 = vunpack.c.h.b16 %v155
    %v515 = vunpack.c.l.b16 %v156
    %v516 = vunpack.c.h.b16 %v156
    %v517 = vunpack.c.l.b16 %v157
    %v518 = vunpack.c.l.b16 %v158
    %v519 = vunpack.c.h.b16 %v158
    %v520 = vunpack.c.l.b16 %v159
    %v521 = vunpack.c.h.b16 %v159
    %v522 = vunpack.c.l.b16 %v160
    %v523 = vunpack.c.l.b16 %v161
    %v524 = vunpack.c.h.b16 %v161
    %v525 = vunpack.c.l.b16 %v162
    %v526 = vunpack.c.h.b16 %v162
    %v527 = vunpack.c.l.b16 %v163
    %v528 = vunpack.c.l.b16 %v164
    %v529 = vunpack.c.h.b16 %v164
    %v530 = vunpack.c.l.b16 %v165
    %v531 = vunpack.c.h.b16 %v165
    %v532 = vunpack.c.l.b16 %v166
    %v533 = vunpack.c.l.b16 %v167
    %v534 = vunpack.c.h.b16 %v167
    %v535 = vunpack.c.l.b16 %v168
    %v536 = vunpack.c.h.b16 %v168
    %v537 = vunpack.c.l.b16 %v169
    %v538 = vunpack.c.l.b16 %v170
    %v539 = vunpack.c.h.b16 %v170
    %v540 = vunpack.c.l.b16 %v171
    %v541 = vunpack.c.h.b16 %v171
    %v542 = vunpack.c.l.b16 %v172
    %v543 = vunpack.c.l.b16 %v173
    %v544 = vunpack.c.h.b16 %v173
    %v545 = vunpack.c.l.b16 %v174
    %v546 = vunpack.c.h.b16 %v174
    %v547 = vunpack.c.l.b16 %v175
    %v548 = vunpack.c.l.b16 %v176
    %v549 = vunpack.c.h.b16 %v176
    %v550 = vunpack.c.l.b16 %v177
    %v551 = vunpack.c.h.b16 %v177
    %v552 = vunpack.c.l.b16 %v178
    %v553 = vunpack.c.l.b16 %v179
    %v554 = vunpack.c.h.b16 %v179
    %v555 = vunpack.c.l.b16 %v180
    %v556 = vunpack.c.h.b16 %v180
    %v557 = vunpack.c.l.b16 %v181
    %v558 = vunpack.c.l.b16 %v182
    %v559 = vunpack.c.h.b16 %v182
    %v560 = vunpack.c.l.b16 %v183
    %v561 = vunpack.c.h.b16 %v183
    %v562 = vunpack.c.l.b16 %v184
    %v563 = vunpack.c.l.b16 %v185
    %v564 = vunpack.c.h.b16 %v185
    %v565 = vunpack.c.l.b16 %v186
    %v566 = vunpack.c.h.b16 %v186
    %v567 = vunpack.c.l.b16 %v187
    %v568 = vunpack.c.l.b16 %v188
    %v569 = vunpack.c.h.b16 %v188
    %v570 = vunpack.c.l.b16 %v189
    %v571 = vunpack.c.h.b16 %v189
    %v572 = vunpack.c.l.b16 %v190
    %v573 = vunpack.c.l.b16 %v191
    %v574 = vunpack.c.h.b16 %v191
    %v575 = vunpack.c.l.b16 %v192
    %v576 = vunpack.c.h.b16 %v192
    %v577 = vunpack.c.l.b16 %v193
    %v578 = vpack.c.b16 %v343, %v338
    %v579 = vpack.c.b16 %v344, %v339
    %v580 = vpack.c.b16 %v345, %v340
    %v581 = vpack.c.b16 %v346, %v341
    %v582 = vpack.c.b16 %v347, %v342
    %v583 = vpack.c.b16 %v353, %v348
    %v584 = vpack.c.b16 %v354, %v349
    %v585 = vpack.c.b16 %v355, %v350
    %v586 = vpack.c.b16 %v356, %v351
    %v587 = vpack.c.b16 %v357, %v352
    %v588 = vpack.c.b16 %v363, %v358
    %v589 = vpack.c.b16 %v364, %v359
    %v590 = vpack.c.b16 %v365, %v360
    %v591 = vpack.c.b16 %v366, %v361
    %v592 = vpack.c.b16 %v367, %v362
    %v593 = vpack.c.b16 %v373, %v368
    %v594 = vpack.c.b16 %v374, %v369
    %v595 = vpack.c.b16 %v375, %v370
    %v596 = vpack.c.b16 %v376, %v371
    %v597 = vpack.c.b16 %v377, %v372
    %v598 = vpack.c.b16 %v383, %v378
    %v599 = vpack.c.b16 %v384, %v379
    %v600 = vpack.c.b16 %v385, %v380
    %v601 = vpack.c.b16 %v386, %v381
    %v602 = vpack.c.b16 %v387, %v382
    %v603 = vpack.c.b16 %v393, %v388
    %v604 = vpack.c.b16 %v394, %v389
    %v605 = vpack.c.b16 %v395, %v390
    %v606 = vpack.c.b16 %v396, %v391
    %v607 = vpack.c.b16 %v397, %v392
    %v608 = vpack.c.b16 %v403, %v398
    %v609 = vpack.c.b16 %v404, %v399
    %v610 = vpack.c.b16 %v405, %v400
    %v611 = vpack.c.b16 %v406, %v401
    %v612 = vpack.c.b16 %v407, %v402
    %v613 = vpack.c.b16 %v413, %v408
    %v614 = vpack.c.b16 %v414, %v409
    %v615 = vpack.c.b16 %v415, %v410
    %v616 = vpack.c.b16 %v416, %v411
    %v617 = vpack.c.b16 %v417, %v412
    %v618 = vpack.c.b16 %v423, %v418
    %v619 = vpack.c.b16 %v424, %v419
    %v620 = vpack.c.b16 %v425, %v420
    %v621 = vpack.c.b16 %v426, %v421
    %v622 = vpack.c.b16 %v427, %v422
    %v623 = vpack.c.b16 %v433, %v428
    %v624 = vpack.c.b16 %v434, %v429
    %v625 = vpack.c.b16 %v435, %v430
    %v626 = vpack.c.b16 %v436, %v431
    %v627 = vpack.c.b16 %v437, %v432
    %v628 = vpack.c.b16 %v443, %v438
    %v629 = vpack.c.b16 %v444, %v439
    %v630 = vpack.c.b16 %v445, %v440
    %v631 = vpack.c.b16 %v446, %v441
    %v632 = vpack.c.b16 %v447, %v442
    %v633 = vpack.c.b16 %v453, %v448
    %v634 = vpack.c.b16 %v454, %v449
    %v635 = vpack.c.b16 %v455, %v450
    %v636 = vpack.c.b16 %v456, %v451
    %v637 = vpack.c.b16 %v457, %v452
    %v638 = vpack.c.b16 %v463, %v458
    %v639 = vpack.c.b16 %v464, %v459
    %v640 = vpack.c.b16 %v465, %v460
    %v641 = vpack.c.b16 %v466, %v461
    %v642 = vpack.c.b16 %v467, %v462
    %v643 = vpack.c.b16 %v473, %v468
    %v644 = vpack.c.b16 %v474, %v469
    %v645 = vpack.c.b16 %v475, %v470
    %v646 = vpack.c.b16 %v476, %v471
    %v647 = vpack.c.b16 %v477, %v472
    %v648 = vpack.c.b16 %v483, %v478
    %v649 = vpack.c.b16 %v484, %v479
    %v650 = vpack.c.b16 %v485, %v480
    %v651 = vpack.c.b16 %v486, %v481
    %v652 = vpack.c.b16 %v487, %v482
    %v653 = vpack.c.b16 %v493, %v488
    %v654 = vpack.c.b16 %v494, %v489
    %v655 = vpack.c.b16 %v495, %v490
    %v656 = vpack.c.b16 %v496, %v491
    %v657 = vpack.c.b16 %v497, %v492
    %v658 = vpack.c.b16 %v503, %v498
    %v659 = vpack.c.b16 %v504, %v499
    %v660 = vpack.c.b16 %v505, %v500
    %v661 = vpack.c.b16 %v506, %v501
    %v662 = vpack.c.b16 %v507, %v502
    %v663 = vpack.c.b16 %v513, %v508
    %v664 = vpack.c.b16 %v514, %v509
    %v665 = vpack.c.b16 %v515, %v510
    %v666 = vpack.c.b16 %v516, %v511
    %v667 = vpack.c.b16 %v517, %v512
    %v668 = vpack.c.b16 %v523, %v518
    %v669 = vpack.c.b16 %v524, %v519
    %v670 = vpack.c.b16 %v525, %v520
    %v671 = vpack.c.b16 %v526, %v521
    %v672 = vpack.c.b16 %v527, %v522
    %v673 = vpack.c.b16 %v533, %v528
    %v674 = vpack.c.b16 %v534, %v529
    %v675 = vpack.c.b16 %v535, %v530
    %v676 = vpack.c.b16 %v536, %v531
    %v677 = vpack.c.b16 %v537, %v532
    %v678 = vpack.c.b16 %v543, %v538
    %v679 = vpack.c.b16 %v544, %v539
    %v680 = vpack.c.b16 %v545, %v540
    %v681 = vpack.c.b16 %v546, %v541
    %v682 = vpack.c.b16 %v547, %v542
    %v683 = vpack.c.b16 %v553, %v548
    %v684 = vpack.c.b16 %v554, %v549
    %v685 = vpack.c.b16 %v555, %v550
    %v686 = vpack.c.b16 %v556, %v551
    %v687 = vpack.c.b16 %v557, %v552
    %v688 = vpack.c.b16 %v563, %v558
    %v689 = vpack.c.b16 %v564, %v559
    %v690 = vpack.c.b16 %v565, %v560
    %v691 = vpack.c.b16 %v566, %v561
    %v692 = vpack.c.b16 %v567, %v562
    %v693 = vpack.c.b16 %v573, %v568
    %v694 = vpack.c.b16 %v574, %v569
    %v695 = vpack.c.b16 %v575, %v570
    %v696 = vpack.c.b16 %v576, %v571
    %v697 = vpack.c.b16 %v577, %v572
    %818 = vmatprep.subr.bf16.mxu0 %v579
    %819 = vmatpush1.bf16.msra.mxu0 %v578
    %820 = vmatprep.subr.bf16.mxu0 %v584
    %821 = vmatpush1.bf16.msra.mxu0 %v583
    %822 = vmatprep.subr.bf16.mxu0 %v589
    %823 = vmatpush1.bf16.msra.mxu0 %v588
    %824 = vmatprep.subr.bf16.mxu0 %v594
    %825 = vmatpush1.bf16.msra.mxu0 %v593
    %826 = vmatprep.subr.bf16.mxu0 %v599
    %827 = vmatpush1.bf16.msra.mxu0 %v598
    %828 = vmatprep.subr.bf16.mxu0 %v604
    %829 = vmatpush1.bf16.msra.mxu0 %v603
    %830 = vmatprep.subr.bf16.mxu0 %v609
    %831 = vmatpush1.bf16.msra.mxu0 %v608
    %832 = vmatprep.subr.bf16.mxu0 %v614
    %833 = vmatpush1.bf16.msra.mxu0 %v613
    %834 = vmatprep.subr.bf16.mxu0 %v619
    %835 = vmatpush1.bf16.msra.mxu0 %v618
    %836 = vmatprep.subr.bf16.mxu0 %v624
    %837 = vmatpush1.bf16.msra.mxu0 %v623
    %838 = vmatprep.subr.bf16.mxu0 %v629
    %839 = vmatpush1.bf16.msra.mxu0 %v628
    %840 = vmatprep.subr.bf16.mxu0 %v634
    %841 = vmatpush1.bf16.msra.mxu0 %v633
    %842 = vmatprep.subr.bf16.mxu0 %v639
    %843 = vmatpush1.bf16.msra.mxu0 %v638
    %844 = vmatprep.subr.bf16.mxu0 %v644
    %845 = vmatpush1.bf16.msra.mxu0 %v643
    %846 = vmatprep.subr.bf16.mxu0 %v649
    %847 = vmatpush1.bf16.msra.mxu0 %v648
    %848 = vmatprep.subr.bf16.mxu0 %v654
    %849 = vmatpush1.bf16.msra.mxu0 %v653
    %850 = vmatprep.mubr.bf16.mxu0 %v46
    %851 = vmatmul.mubr.bf16.gmra.mrb[0].mxu0 %v43
    %v852 = vpop.f32.mrb[0].mxu0
    %v853 = vadd.f32 0.0, %v852
    %v854 = vpop.f32.mrb[0].mxu0
    %v855 = vadd.f32 0.0, %v854
    %v856 = vpop.f32.mrb[0].mxu0
    %v857 = vpop.f32.mrb[0].mxu0
    %858 = vdwg.mxu0
    %859 = vmatprep.subr.bf16.mxu0 %v659
    %860 = vmatpush1.bf16.msra.mxu0 %v658
    %861 = vmatprep.subr.bf16.mxu0 %v664
    %862 = vmatpush1.bf16.msra.mxu0 %v663
    %863 = vmatprep.subr.bf16.mxu0 %v669
    %864 = vmatpush1.bf16.msra.mxu0 %v668
    %865 = vmatprep.subr.bf16.mxu0 %v674
    %866 = vmatpush1.bf16.msra.mxu0 %v673
    %867 = vmatprep.subr.bf16.mxu0 %v679
    %868 = vmatpush1.bf16.msra.mxu0 %v678
    %869 = vmatprep.subr.bf16.mxu0 %v684
    %870 = vmatpush1.bf16.msra.mxu0 %v683
    %871 = vmatprep.subr.bf16.mxu0 %v689
    %872 = vmatpush1.bf16.msra.mxu0 %v688
    %873 = vmatprep.subr.bf16.mxu0 %v694
    %874 = vmatpush1.bf16.msra.mxu0 %v693
    %875 = vmatprep.subr.bf16.mxu0 0
    %876 = vmatpush1.bf16.msra.mxu0 0
    %877 = vmatprep.subr.bf16.mxu0 0
    %878 = vmatpush1.bf16.msra.mxu0 0
    %879 = vmatprep.subr.bf16.mxu0 0
    %880 = vmatpush1.bf16.msra.mxu0 0
    %881 = vmatprep.subr.bf16.mxu0 0
    %882 = vmatpush1.bf16.msra.mxu0 0
    %883 = vmatprep.subr.bf16.mxu0 0
    %884 = vmatpush1.bf16.msra.mxu0 0
    %885 = vmatprep.subr.bf16.mxu0 0
    %886 = vmatpush1.bf16.msra.mxu0 0
    %887 = vmatprep.subr.bf16.mxu0 0
    %888 = vmatpush1.bf16.msra.mxu0 0
    %889 = vmatprep.subr.bf16.mxu0 0
    %890 = vmatpush1.bf16.msra.mxu0 0
    %891 = vmatprep.mubr.bf16.mxu0 0
    %892 = vmatmul.mubr.bf16.gmra.mrb[0].mxu0 %v49
    %v893 = vpop.f32.mrb[0].mxu0
    %v894 = vadd.f32 %v853, %v893
    %v895 = vpop.f32.mrb[0].mxu0
    %v896 = vadd.f32 %v855, %v895
    %v897 = vpop.f32.mrb[0].mxu0
    %v898 = vpop.f32.mrb[0].mxu0
    %899 = vdwg.mxu0
    %900 = vmatprep.subr.bf16.mxu0 %v581
    %901 = vmatpush1.bf16.msra.mxu0 %v580
    %902 = vmatprep.subr.bf16.mxu0 %v586
    %903 = vmatpush1.bf16.msra.mxu0 %v585
    %904 = vmatprep.subr.bf16.mxu0 %v591
    %905 = vmatpush1.bf16.msra.mxu0 %v590
    %906 = vmatprep.subr.bf16.mxu0 %v596
    %907 = vmatpush1.bf16.msra.mxu0 %v595
    %908 = vmatprep.subr.bf16.mxu0 %v601
    %909 = vmatpush1.bf16.msra.mxu0 %v600
    %910 = vmatprep.subr.bf16.mxu0 %v606
    %911 = vmatpush1.bf16.msra.mxu0 %v605
    %912 = vmatprep.subr.bf16.mxu0 %v611
    %913 = vmatpush1.bf16.msra.mxu0 %v610
    %914 = vmatprep.subr.bf16.mxu0 %v616
    %915 = vmatpush1.bf16.msra.mxu0 %v615
    %916 = vmatprep.subr.bf16.mxu0 %v621
    %917 = vmatpush1.bf16.msra.mxu0 %v620
    %918 = vmatprep.subr.bf16.mxu0 %v626
    %919 = vmatpush1.bf16.msra.mxu0 %v625
    %920 = vmatprep.subr.bf16.mxu0 %v631
    %921 = vmatpush1.bf16.msra.mxu0 %v630
    %922 = vmatprep.subr.bf16.mxu0 %v636
    %923 = vmatpush1.bf16.msra.mxu0 %v635
    %924 = vmatprep.subr.bf16.mxu0 %v641
    %925 = vmatpush1.bf16.msra.mxu0 %v640
    %926 = vmatprep.subr.bf16.mxu0 %v646
    %927 = vmatpush1.bf16.msra.mxu0 %v645
    %928 = vmatprep.subr.bf16.mxu0 %v651
    %929 = vmatpush1.bf16.msra.mxu0 %v650
    %930 = vmatprep.subr.bf16.mxu0 %v656
    %931 = vmatpush1.bf16.msra.mxu0 %v655
    %932 = vmatprep.mubr.bf16.mxu0 %v46
    %933 = vmatmul.mubr.bf16.gmra.mrb[0].mxu0 %v43
    %v934 = vpop.f32.mrb[0].mxu0
    %v935 = vadd.f32 0.0, %v934
    %v936 = vpop.f32.mrb[0].mxu0
    %v937 = vadd.f32 0.0, %v936
    %v938 = vpop.f32.mrb[0].mxu0
    %v939 = vpop.f32.mrb[0].mxu0
    %940 = vdwg.mxu0
    %941 = vmatprep.subr.bf16.mxu0 %v661
    %942 = vmatpush1.bf16.msra.mxu0 %v660
    %943 = vmatprep.subr.bf16.mxu0 %v666
    %944 = vmatpush1.bf16.msra.mxu0 %v665
    %945 = vmatprep.subr.bf16.mxu0 %v671
    %946 = vmatpush1.bf16.msra.mxu0 %v670
    %947 = vmatprep.subr.bf16.mxu0 %v676
    %948 = vmatpush1.bf16.msra.mxu0 %v675
    %949 = vmatprep.subr.bf16.mxu0 %v681
    %950 = vmatpush1.bf16.msra.mxu0 %v680
    %951 = vmatprep.subr.bf16.mxu0 %v686
    %952 = vmatpush1.bf16.msra.mxu0 %v685
    %953 = vmatprep.subr.bf16.mxu0 %v691
    %954 = vmatpush1.bf16.msra.mxu0 %v690
    %955 = vmatprep.subr.bf16.mxu0 %v696
    %956 = vmatpush1.bf16.msra.mxu0 %v695
    %957 = vmatprep.subr.bf16.mxu0 0
    %958 = vmatpush1.bf16.msra.mxu0 0
    %959 = vmatprep.subr.bf16.mxu0 0
    %960 = vmatpush1.bf16.msra.mxu0 0
    %961 = vmatprep.subr.bf16.mxu0 0
    %962 = vmatpush1.bf16.msra.mxu0 0
    %963 = vmatprep.subr.bf16.mxu0 0
    %964 = vmatpush1.bf16.msra.mxu0 0
    %965 = vmatprep.subr.bf16.mxu0 0
    %966 = vmatpush1.bf16.msra.mxu0 0
    %967 = vmatprep.subr.bf16.mxu0 0
    %968 = vmatpush1.bf16.msra.mxu0 0
    %969 = vmatprep.subr.bf16.mxu0 0
    %970 = vmatpush1.bf16.msra.mxu0 0
    %971 = vmatprep.subr.bf16.mxu0 0
    %972 = vmatpush1.bf16.msra.mxu0 0
    %973 = vmatprep.mubr.bf16.mxu0 0
    %974 = vmatmul.mubr.bf16.gmra.mrb[0].mxu0 %v49
    %v975 = vpop.f32.mrb[0].mxu0
    %v976 = vadd.f32 %v935, %v975
    %v977 = vpop.f32.mrb[0].mxu0
    %v978 = vadd.f32 %v937, %v977
    %v979 = vpop.f32.mrb[0].mxu0
    %v980 = vpop.f32.mrb[0].mxu0
    %981 = vdwg.mxu0
    %982 = vmatprep.subr.bf16.mxu0 0
    %983 = vmatpush1.bf16.msra.mxu0 %v582
    %984 = vmatprep.subr.bf16.mxu0 0
    %985 = vmatpush1.bf16.msra.mxu0 %v587
    %986 = vmatprep.subr.bf16.mxu0 0
    %987 = vmatpush1.bf16.msra.mxu0 %v592
    %988 = vmatprep.subr.bf16.mxu0 0
    %989 = vmatpush1.bf16.msra.mxu0 %v597
    %990 = vmatprep.subr.bf16.mxu0 0
    %991 = vmatpush1.bf16.msra.mxu0 %v602
    %992 = vmatprep.subr.bf16.mxu0 0
    %993 = vmatpush1.bf16.msra.mxu0 %v607
    %994 = vmatprep.subr.bf16.mxu0 0
    %995 = vmatpush1.bf16.msra.mxu0 %v612
    %996 = vmatprep.subr.bf16.mxu0 0
    %997 = vmatpush1.bf16.msra.mxu0 %v617
    %998 = vmatprep.subr.bf16.mxu0 0
    %999 = vmatpush1.bf16.msra.mxu0 %v622
    %1000 = vmatprep.subr.bf16.mxu0 0
    %1001 = vmatpush1.bf16.msra.mxu0 %v627
    %1002 = vmatprep.subr.bf16.mxu0 0
    %1003 = vmatpush1.bf16.msra.mxu0 %v632
    %1004 = vmatprep.subr.bf16.mxu0 0
    %1005 = vmatpush1.bf16.msra.mxu0 %v637
    %1006 = vmatprep.subr.bf16.mxu0 0
    %1007 = vmatpush1.bf16.msra.mxu0 %v642
    %1008 = vmatprep.subr.bf16.mxu0 0
    %1009 = vmatpush1.bf16.msra.mxu0 %v647
    %1010 = vmatprep.subr.bf16.mxu0 0
    %1011 = vmatpush1.bf16.msra.mxu0 %v652
    %1012 = vmatprep.subr.bf16.mxu0 0
    %1013 = vmatpush1.bf16.msra.mxu0 %v657
    %1014 = vmatprep.mubr.bf16.mxu0 %v46
    %1015 = vmatmul.mubr.bf16.gmra.mrb[0].mxu0 %v43
    %v1016 = vpop.f32.mrb[0].mxu0
    %v1017 = vadd.f32 0.0, %v1016
    %v1018 = vpop.f32.mrb[0].mxu0
    %v1019 = vpop.f32.mrb[0].mxu0
    %v1020 = vpop.f32.mrb[0].mxu0
    %1021 = vdwg.mxu0
    %1022 = vmatprep.subr.bf16.mxu0 0
    %1023 = vmatpush1.bf16.msra.mxu0 %v662
    %1024 = vmatprep.subr.bf16.mxu0 0
    %1025 = vmatpush1.bf16.msra.mxu0 %v667
    %1026 = vmatprep.subr.bf16.mxu0 0
    %1027 = vmatpush1.bf16.msra.mxu0 %v672
    %1028 = vmatprep.subr.bf16.mxu0 0
    %1029 = vmatpush1.bf16.msra.mxu0 %v677
    %1030 = vmatprep.subr.bf16.mxu0 0
    %1031 = vmatpush1.bf16.msra.mxu0 %v682
    %1032 = vmatprep.subr.bf16.mxu0 0
    %1033 = vmatpush1.bf16.msra.mxu0 %v687
    %1034 = vmatprep.subr.bf16.mxu0 0
    %1035 = vmatpush1.bf16.msra.mxu0 %v692
    %1036 = vmatprep.subr.bf16.mxu0 0
    %1037 = vmatpush1.bf16.msra.mxu0 %v697
    %1038 = vmatprep.subr.bf16.mxu0 0
    %1039 = vmatpush1.bf16.msra.mxu0 0
    %1040 = vmatprep.subr.bf16.mxu0 0
    %1041 = vmatpush1.bf16.msra.mxu0 0
    %1042 = vmatprep.subr.bf16.mxu0 0
    %1043 = vmatpush1.bf16.msra.mxu0 0
    %1044 = vmatprep.subr.bf16.mxu0 0
    %1045 = vmatpush1.bf16.msra.mxu0 0
    %1046 = vmatprep.subr.bf16.mxu0 0
    %1047 = vmatpush1.bf16.msra.mxu0 0
    %1048 = vmatprep.subr.bf16.mxu0 0
    %1049 = vmatpush1.bf16.msra.mxu0 0
    %1050 = vmatprep.subr.bf16.mxu0 0
    %1051 = vmatpush1.bf16.msra.mxu0 0
    %1052 = vmatprep.subr.bf16.mxu0 0
    %1053 = vmatpush1.bf16.msra.mxu0 0
    %1054 = vmatprep.mubr.bf16.mxu0 0
    %1055 = vmatmul.mubr.bf16.gmra.mrb[0].mxu0 %v49
    %v1056 = vpop.f32.mrb[0].mxu0
    %v1057 = vadd.f32 %v1017, %v1056
    %v1058 = vpop.f32.mrb[0].mxu0
    %v1059 = vpop.f32.mrb[0].mxu0
    %v1060 = vpop.f32.mrb[0].mxu0
    %1061 = vdwg.mxu0
    %v1062 = vld [vmem:[%s2] sm:$0x1f]
    %v1068 = vcombine.low %v894, %v896
    %v1069 = vcombine.low %v976, %v978
    %v1071 = vunpack.c.l.s4 1966171168
    %v1072 = vunpack.c.0.s8 %v1071
    %v1073 = vlaneseq
    %v1074 = vshrl.u32 %v1073, 7
    %v1075 = vsub.s32 %v1072, %v1074
    %v1076 = vrot.slane %v1068, %v1075
    %v1078 = vunpack.c.l.s4 1966171168
    %v1079 = vunpack.c.0.s8 %v1078
    %v1080 = vlaneseq
    %v1081 = vshrl.u32 %v1080, 7
    %v1082 = vsub.s32 %v1079, %v1081
    %v1083 = vrot.slane %v1069, %v1082
    %v1085 = vunpack.c.l.s4 1966171168
    %v1086 = vunpack.c.0.s8 %v1085
    %v1087 = vlaneseq
    %v1088 = vshrl.u32 %v1087, 7
    %v1089 = vsub.s32 %v1086, %v1088
    %v1090 = vrot.slane %v1057, %v1089
    %v1091 = vcombine.low %v1076, %v1083
    %v1093 = vunpack.c.l.s4 1966171168
    %v1094 = vunpack.c.0.s8 %v1093
    %v1095 = vlaneseq
    %v1096 = vshrl.u32 %v1095, 7
    %v1097 = vsub.s32 %v1094, %v1096
    %v1098 = vrot.slane %v1091, %v1097
    %v1100 = vunpack.c.l.s4 1966171168
    %v1101 = vunpack.c.0.s8 %v1100
    %v1102 = vlaneseq
    %v1103 = vshrl.u32 %v1102, 7
    %v1104 = vsub.s32 %v1101, %v1103
    %v1105 = vrot.slane %v1090, %v1104
    %v1106 = vcombine.low %v1098, %v1105
    %v1108 = vsub.f32 %v1062, %v1106
    %v1109 = vmul.f32 %v1108, %v1108
    %v1110 = vlaneseq
    %vm1111 = vcmp.ge.s32.totalorder %v1110, 0
    %vm1112 = vcmp.lt.s32.totalorder %v1110, 640
    %vm1113 = vmand %vm1111, %vm1112
    %1114 = vst.msk [vmem:[#allocation7] sm:$0x1f] %vm1113, %v1109
    // Predicated region
    $region22: #{tpu_custom_call.1} parent=1 // pred_check
      _
    $region23: #{tpu_custom_call.1} parent=1 // pred_check_branch
      %1116 = sbr.rel (0) target = $region25
    $region24: #{tpu_custom_call.1} parent=1 // pred_region
      %s1118 = ssub.s32 80, 80
      %1119 = vsyncadd [#allocation4], %s1118
      %s1121 = sshll.u32 [#allocation7], 4
      %s1122 = int_to_ptr.vmem [resolvable:$true] %s1121
      %1124 = dma.vmem_to_hbm [thread:$0]  %s1122, 80, %s3, [#allocation4]
    $region25: #{tpu_custom_call.1} parent=1 // pred_fallthru
      _
    // Predicated region
    $region26: #{tpu_custom_call.1} parent=1 // pred_check
      _
    $region27: #{tpu_custom_call.1} parent=1 // pred_check_branch
      %1126 = sbr.rel (0) target = $region29
    $region28: #{tpu_custom_call.1} parent=1 // pred_region
      %1127 = dma.done [#allocation4], 80
    $region29: #{tpu_custom_call.1} parent=1 // pred_fallthru
      _
    %1128 = vsyncpa [#allocation3], 1
    %1129 = vsyncpa [#allocation6], 1
    %1130 = vsyncpa [#allocation4], 1

</llo_original>
